<compile_context>
chip_gen: v5e
topology: v5e:2x2
jax: 0.10.0
libtpu: 0.0.40
codegen_flags: <defaults>
</compile_context>

<pallas_src>
import math
import functools

import jax
import jax.numpy as jnp
import numpy as np
from jax.experimental import pallas as pl
from jax.experimental.pallas import tpu as pltpu


def _round_up(x, m):
    return ((x + m - 1) // m) * m


# ---------------------------------------------------------------------------
# Fused Pallas kernel: whole MLP2 forward for one row-tile.
# ---------------------------------------------------------------------------
def _fused_mlp2_kernel(*refs, n_fcs1, n_fcs2, hidden_dim, output_dim1,
                       out_pad, compute_dtype):
    # refs = (x_ref,                         # (tile_m, input_dim) bf16
    #         w_0, ..., w_{n_fcs1},          # fcs1 weights + output_linear, bf16
    #         b_stack_ref,                   # (n_layers, max_b) f32 stacked biases
    #         out_ref)                       # (tile_m, out_w_pad) f32
    x_ref = refs[0]
    n_pairs = n_fcs1 + 1
    w_refs = refs[1:1 + n_pairs]
    b_ref = refs[1 + n_pairs]
    out_ref = refs[2 + n_pairs]

    def linear(h, j, relu, out_dtype):
        w = w_refs[j][...]                              # bf16 (K, N), VMEM-resident
        n = w.shape[1]
        b = b_ref[j:j + 1, :n]                          # (1, N) f32, static slice
        y = jnp.dot(h, w, preferred_element_type=jnp.float32) + b
        if relu:
            y = jnp.maximum(y, 0.0)
        return y.astype(out_dtype)

    h = x_ref[...]                                      # bf16 activation

    # fcs1 chain (statically unrolled): bf16 between layers, f32 for the
    # layer whose output feeds the oup1 slice.
    for j in range(n_fcs1 - 1):
        h = linear(h, j, relu=True, out_dtype=compute_dtype)
    h_full = linear(h, n_fcs1 - 1, relu=True, out_dtype=jnp.float32)

    # Split inside the kernel (hidden_dim is a 128-lane multiple -> free slice).
    oup1 = h_full[:, hidden_dim:hidden_dim + output_dim1]   # f32
    h = h_full[:, :hidden_dim].astype(compute_dtype)

    # Second block: the (truncated) source forward literally applies fcs1[i].
    for i in range(n_fcs2):
        h = linear(h, i, relu=True, out_dtype=compute_dtype)

    # TODO(synk): source forward is truncated after the second loop; apply
    # output_linear as the natural tail -> oup2.
    oup2 = linear(h, n_fcs1, relu=False, out_dtype=jnp.float32)

    # Single lane-dense output slab: [oup1 | oup2 | zero pad to 128-multiple].
    tm = oup2.shape[0]
    pieces = [oup1, oup2]
    if out_pad:
        pieces.append(jnp.zeros((tm, out_pad), jnp.float32))
    out_ref[...] = jnp.concatenate(pieces, axis=-1)


# ---------------------------------------------------------------------------
# Wrapper: one fused pallas_call, row-tiled over M = batch * N_v.
# ---------------------------------------------------------------------------
def mlp2_forward(params, inp, condition, *, output_dim1,
                 compute_dtype=jnp.bfloat16, tile_m_cap=1024):
    # TODO(synk): the source forward has "..." after the oup1 split
    # (presumably consuming `condition`); it is not shown, so `condition`
    # and the fcs2 weights are unused, matching the literal source.
    del condition

    batch, n_v, input_dim = inp.shape
    M = batch * n_v
    x = inp.reshape(M, input_dim)

    fcs1 = params["fcs1"]
    w_out, b_out = params["output"]
    n_fcs1 = len(fcs1)
    n_fcs2 = len(params["fcs2"])
    hidden_dim = fcs1[0][0].shape[1]
    output_dim2 = w_out.shape[1]

    # The verbatim fcs1-reuse second loop is only shape-consistent when
    # input_dim == hidden_dim; the oup1 split is only a free slice when
    # hidden_dim is a 128-lane multiple.
    assert input_dim == hidden_dim, "second loop reuses fcs1[0]: need input_dim == hidden_dim"
    assert hidden_dim % 128 == 0, "oup1 split must land on a 128-lane boundary"

    all_pairs = list(fcs1) + [(w_out, b_out)]
    n_pairs = len(all_pairs)
    widths = [w.shape[1] for (w, _) in all_pairs]

    # ---- stacked biases: one (n_pairs, max_b) f32 operand ----
    max_b = _round_up(max(widths), 128)
    b_stack = jnp.zeros((n_pairs, max_b), jnp.float32)
    for j, (_w, b) in enumerate(all_pairs):
        b_stack = b_stack.at[j, :b.shape[0]].set(b.astype(jnp.float32))

    # ---- operands: x + weights in bf16 (MXU native), stacked biases in f32 ----
    operands = [x.astype(compute_dtype)]
    for (w, _b) in all_pairs:
        operands.append(w.astype(compute_dtype))
    operands.append(b_stack)

    # ---- lane-dense consolidated output ----
    out_w = output_dim1 + output_dim2
    out_w_pad = _round_up(out_w, 128)
    out_pad = out_w_pad - out_w

    # ---- VMEM-aware tile sizing ----
    cdt = jnp.dtype(compute_dtype).itemsize
    param_bytes = (sum(int(np.prod(w.shape)) * cdt for (w, _) in all_pairs)
                   + n_pairs * max_b * 4)
    max_width = max([input_dim] + widths)

    def vmem_est(tm):
        # 2x: default double-buffering of pipelined blocks.
        # TODO(synk): pipeline_mode=pl.Buffered(1) on the constant-index weight
        # blocks would halve their resident footprint; left out to stay on the
        # known-good default pipelining path.
        return (2 * param_bytes
                + 2 * tm * input_dim * cdt
                + 2 * tm * out_w_pad * 4
                + 6 * tm * max_width * 4)

    try:
        info = pltpu.get_tpu_info()
        vmem_cap = int(getattr(info, "vmem_capacity_bytes", 64 * 2**20))
    except Exception:  # pragma: no cover - conservative fallback
        vmem_cap = 64 * 2**20
    # Leave headroom under the physical VMEM (64 MiB on v7x, 128 MiB v5e/v6e).
    vmem_budget = min(int(vmem_cap * 0.7), 96 * 2**20)

    granule = 16  # bf16 sublane packing
    if M <= granule:
        tile_m = M
    else:
        # Split rows across (up to) 2 TensorCores (v7x megacore) and cap.
        tile_m = min(tile_m_cap, _round_up(pl.cdiv(M, 2), granule))
        tile_m = max(tile_m, granule)
        # Shrink the tile (not just the limit) until the working set fits.
        while tile_m > granule and vmem_est(tile_m) > vmem_budget:
            tile_m = max(granule, _round_up(tile_m // 2, granule))
    grid_m = pl.cdiv(M, tile_m)
    vmem_limit = int(min(max(vmem_est(tile_m) + 2 * 2**20, 8 * 2**20),
                         vmem_budget))

    # ---- specs ----
    in_specs = [pl.BlockSpec((tile_m, input_dim), lambda i: (i, 0))]
    for (w, _b) in all_pairs:
        k_dim, n_dim = w.shape
        in_specs.append(pl.BlockSpec((k_dim, n_dim), lambda i: (0, 0)))
    in_specs.append(pl.BlockSpec((n_pairs, max_b), lambda i: (0, 0)))
    out_specs = pl.BlockSpec((tile_m, out_w_pad), lambda i: (i, 0))
    out_shape = jax.ShapeDtypeStruct((M, out_w_pad), jnp.float32)

    # ---- cost estimate ----
    layer_dims = ([w.shape for (w, _) in fcs1]
                  + [fcs1[i][0].shape for i in range(n_fcs2)]
                  + [w_out.shape])
    flops = sum(2 * M * k * n for (k, n) in layer_dims)
    bytes_accessed = (M * input_dim * cdt + param_bytes + M * out_w_pad * 4)

    # NOTE: 128-wide layers fill only ~1/4 of the 256x256 MXU on v6e/v7x;
    # prefer hidden_dim multiples of 256 when the model config allows it.
    # TODO(synk): optional fp8 weights (v7x MXU) with per-layer scales.
    kernel = functools.partial(
        _fused_mlp2_kernel, n_fcs1=n_fcs1, n_fcs2=n_fcs2,
        hidden_dim=hidden_dim, output_dim1=output_dim1,
        out_pad=out_pad, compute_dtype=compute_dtype)

    out_full = pl.pallas_call(
        kernel,
        out_shape=out_shape,
        grid_spec=pltpu.PrefetchScalarGridSpec(
            num_scalar_prefetch=0,
            grid=(grid_m,),
            in_specs=in_specs,
            out_specs=out_specs,
        ),
        compiler_params=pltpu.CompilerParams(
            dimension_semantics=("parallel",),
            vmem_limit_bytes=vmem_limit,
        ),
        cost_estimate=pl.CostEstimate(
            flops=flops, transcendentals=0, bytes_accessed=bytes_accessed),
    )(*operands)

    oup1 = out_full[:, :output_dim1]
    oup2 = out_full[:, output_dim1:output_dim1 + output_dim2]
    return oup1, oup2


# ---------------------------------------------------------------------------
# Pure-JAX reference (identical math / casts) for a correctness check.
# ---------------------------------------------------------------------------
def mlp2_forward_reference(params, inp, condition, *, output_dim1,
                           compute_dtype=jnp.bfloat16):
    del condition
    batch, n_v, input_dim = inp.shape
    h = inp.reshape(batch * n_v, input_dim)
    hidden_dim = params["fcs1"][0][0].shape[1]

    def linear(h, w, b, relu):
        y = jnp.dot(h.astype(compute_dtype), w.astype(compute_dtype),
                    preferred_element_type=jnp.float32) + b.astype(jnp.float32)
        return jnp.maximum(y, 0.0) if relu else y

    for (w, b) in params["fcs1"]:
        h = linear(h, w, b, True)
    oup1 = h[:, hidden_dim:hidden_dim + output_dim1]
    h = h[:, :hidden_dim]
    for i in range(len(params["fcs2"])):
        w, b = params["fcs1"][i]
        h = linear(h, w, b, True)
    w, b = params["output"]
    oup2 = linear(h, w, b, False)
    return oup1, oup2


# ---------------------------------------------------------------------------
# Parameter construction (mirrors MLP2.__init__); deterministic init.
# ---------------------------------------------------------------------------
def _init_linear(key, in_dim, out_dim):
    # PyTorch nn.Linear default: U(-1/sqrt(in), 1/sqrt(in)) for weight & bias.
    kw, kb = jax.random.split(key)
    bound = 1.0 / math.sqrt(in_dim)
    # Stored already transposed: (in_dim, out_dim).
    w = jax.random.uniform(kw, (in_dim, out_dim), jnp.float32, -bound, bound)
    b = jax.random.uniform(kb, (out_dim,), jnp.float32, -bound, bound)
    return w, b


def init_mlp2_params(key, input_dim, condition_dim, output_dim1, output_dim2,
                     hidden_dim=256, hidden_layers=8):
    mid_layers = math.ceil(hidden_layers / 2.0)

    fcs1_dims = [(input_dim, hidden_dim)]
    for i in range(mid_layers):
        if i != mid_layers - 1:
            fcs1_dims.append((hidden_dim, hidden_dim))
        else:
            fcs1_dims.append((hidden_dim, hidden_dim + output_dim1))

    fcs2_dims = []
    for i in range(mid_layers, hidden_layers - 1):
        if i != 0:  # always true for mid_layers >= 1 (literal __init__)
            fcs2_dims.append((hidden_dim, hidden_dim))
        else:
            fcs2_dims.append((hidden_dim + condition_dim, hidden_dim))

    n_layers = len(fcs1_dims) + len(fcs2_dims) + 1
    keys = jax.random.split(key, n_layers)
    k_iter = iter(keys)

    params = {
        "fcs1": [_init_linear(next(k_iter), i, o) for (i, o) in fcs1_dims],
        "fcs2": [_init_linear(next(k_iter), i, o) for (i, o) in fcs2_dims],
        "output": _init_linear(next(k_iter), hidden_dim, output_dim2),
    }
    return params


# ---------------------------------------------------------------------------
# Demo
# ---------------------------------------------------------------------------
if __name__ == "__main__":
    # Small, shape-consistent configuration: input_dim == hidden_dim so the
    # verbatim-reproduced second loop is well-typed; hidden is lane-aligned.
    BATCH, N_V = 2, 8
    INPUT_DIM = 128
    CONDITION_DIM = 4
    OUTPUT_DIM1 = 8
    OUTPUT_DIM2 = 8
    HIDDEN_DIM = 128
    HIDDEN_LAYERS = 4

    root = jax.random.PRNGKey(0)
    k_params, k_in, k_cond = jax.random.split(root, 3)

    params = init_mlp2_params(
        k_params, INPUT_DIM, CONDITION_DIM, OUTPUT_DIM1, OUTPUT_DIM2,
        hidden_dim=HIDDEN_DIM, hidden_layers=HIDDEN_LAYERS)

    x = jax.random.normal(k_in, (BATCH, N_V, INPUT_DIM), jnp.float32)
    cond = jax.random.normal(k_cond, (BATCH, N_V, CONDITION_DIM), jnp.float32)

    oup1, oup2 = mlp2_forward(params, x, cond, output_dim1=OUTPUT_DIM1)
    jax.block_until_ready(oup1)
    jax.block_until_ready(oup2)

    assert oup1.shape == (BATCH * N_V, OUTPUT_DIM1), oup1.shape
    assert oup2.shape == (BATCH * N_V, OUTPUT_DIM2), oup2.shape

    # Correctness check against a pure-JAX reference using identical casts.
    ref1, ref2 = mlp2_forward_reference(params, x, cond, output_dim1=OUTPUT_DIM1)
    np.testing.assert_allclose(np.asarray(oup1), np.asarray(ref1),
                               rtol=5e-2, atol=5e-2)
    np.testing.assert_allclose(np.asarray(oup2), np.asarray(ref2),
                               rtol=5e-2, atol=5e-2)

    print("KERNEL_OK")
</pallas_src>

<mosaic_0001>
module attributes {stable_mosaic.version = 11 : i64} {
  func.func @_fused_mlp2_kernel(%arg0: i32, %arg1: memref<16x128xbf16, #tpu.memory_space<vmem>>, %arg2: memref<128x128xbf16, #tpu.memory_space<vmem>>, %arg3: memref<128x128xbf16, #tpu.memory_space<vmem>>, %arg4: memref<128x136xbf16, #tpu.memory_space<vmem>>, %arg5: memref<128x8xbf16, #tpu.memory_space<vmem>>, %arg6: memref<4x256xf32, #tpu.memory_space<vmem>>, %arg7: memref<16x128xf32, #tpu.memory_space<vmem>>) attributes {dimension_semantics = [#tpu.dimension_semantics<parallel>], iteration_bounds = array<i64: 1>, scalar_prefetch = 0 : i64, scratch_operands = 0 : i64, tpu.core_type = #tpu.core_type<tc>, window_params = [{transform_indices = @transform_0, window_bounds = array<i64: 16, 128>}, {pipeline_mode = #tpu.pipeline_mode<synchronous>, transform_indices = @transform_1, window_bounds = array<i64: 128, 128>}, {pipeline_mode = #tpu.pipeline_mode<synchronous>, transform_indices = @transform_2, window_bounds = array<i64: 128, 128>}, {pipeline_mode = #tpu.pipeline_mode<synchronous>, transform_indices = @transform_3, window_bounds = array<i64: 128, 136>}, {pipeline_mode = #tpu.pipeline_mode<synchronous>, transform_indices = @transform_4, window_bounds = array<i64: 128, 8>}, {pipeline_mode = #tpu.pipeline_mode<synchronous>, transform_indices = @transform_5, window_bounds = array<i64: 4, 256>}, {transform_indices = @transform_6, window_bounds = array<i64: 16, 128>}]} {
    %c0 = arith.constant 0 : index
    %c0_0 = arith.constant 0 : index
    %0 = vector.load %arg1[%c0, %c0_0] : memref<16x128xbf16, #tpu.memory_space<vmem>>, vector<16x128xbf16>
    %c0_1 = arith.constant 0 : index
    %c0_2 = arith.constant 0 : index
    %1 = vector.load %arg2[%c0_1, %c0_2] : memref<128x128xbf16, #tpu.memory_space<vmem>>, vector<128x128xbf16>
    %c0_3 = arith.constant 0 : index
    %c0_4 = arith.constant 0 : index
    %2 = vector.load %arg6[%c0_3, %c0_4] : memref<4x256xf32, #tpu.memory_space<vmem>>, vector<1x128xf32>
    %cst = arith.constant dense<0.000000e+00> : vector<16x128xf32>
    %3 = tpu.matmul %0, %1, %cst {dimension_numbers = #tpu.dot_dimension_numbers<[1], [0], [0], [1], [0, 0, 1, 1], [], []>} : vector<16x128xbf16>, vector<128x128xbf16>, vector<16x128xf32> -> vector<16x128xf32>
    %4 = vector.broadcast %2 : vector<1x128xf32> to vector<16x128xf32>
    %5 = arith.addf %3, %4 : vector<16x128xf32>
    %cst_5 = arith.constant 0.000000e+00 : f32
    %6 = vector.broadcast %cst_5 : f32 to vector<16x128xf32>
    %7 = arith.maximumf %5, %6 : vector<16x128xf32>
    %8 = arith.truncf %7 : vector<16x128xf32> to vector<16x128xbf16>
    %c0_6 = arith.constant 0 : index
    %c0_7 = arith.constant 0 : index
    %9 = vector.load %arg3[%c0_6, %c0_7] : memref<128x128xbf16, #tpu.memory_space<vmem>>, vector<128x128xbf16>
    %c1 = arith.constant 1 : index
    %c0_8 = arith.constant 0 : index
    %10 = vector.load %arg6[%c1, %c0_8] : memref<4x256xf32, #tpu.memory_space<vmem>>, vector<1x128xf32>
    %cst_9 = arith.constant dense<0.000000e+00> : vector<16x128xf32>
    %11 = tpu.matmul %8, %9, %cst_9 {dimension_numbers = #tpu.dot_dimension_numbers<[1], [0], [0], [1], [0, 0, 1, 1], [], []>} : vector<16x128xbf16>, vector<128x128xbf16>, vector<16x128xf32> -> vector<16x128xf32>
    %12 = vector.broadcast %10 : vector<1x128xf32> to vector<16x128xf32>
    %13 = arith.addf %11, %12 : vector<16x128xf32>
    %cst_10 = arith.constant 0.000000e+00 : f32
    %14 = vector.broadcast %cst_10 : f32 to vector<16x128xf32>
    %15 = arith.maximumf %13, %14 : vector<16x128xf32>
    %16 = arith.truncf %15 : vector<16x128xf32> to vector<16x128xbf16>
    %c0_11 = arith.constant 0 : index
    %c0_12 = arith.constant 0 : index
    %17 = vector.load %arg4[%c0_11, %c0_12] : memref<128x136xbf16, #tpu.memory_space<vmem>>, vector<128x136xbf16>
    %c2 = arith.constant 2 : index
    %c0_13 = arith.constant 0 : index
    %18 = vector.load %arg6[%c2, %c0_13] : memref<4x256xf32, #tpu.memory_space<vmem>>, vector<1x136xf32>
    %cst_14 = arith.constant dense<0.000000e+00> : vector<16x136xf32>
    %19 = tpu.matmul %16, %17, %cst_14 {dimension_numbers = #tpu.dot_dimension_numbers<[1], [0], [0], [1], [0, 0, 1, 1], [], []>} : vector<16x128xbf16>, vector<128x136xbf16>, vector<16x136xf32> -> vector<16x136xf32>
    %20 = vector.broadcast %18 : vector<1x136xf32> to vector<16x136xf32>
    %21 = arith.addf %19, %20 : vector<16x136xf32>
    %cst_15 = arith.constant 0.000000e+00 : f32
    %22 = vector.broadcast %cst_15 : f32 to vector<16x136xf32>
    %23 = arith.maximumf %21, %22 : vector<16x136xf32>
    %24 = vector.extract_strided_slice %23 {offsets = [0, 128], sizes = [16, 8], strides = [1, 1]} : vector<16x136xf32> to vector<16x8xf32>
    %25 = vector.extract_strided_slice %23 {offsets = [0, 0], sizes = [16, 128], strides = [1, 1]} : vector<16x136xf32> to vector<16x128xf32>
    %26 = arith.truncf %25 : vector<16x128xf32> to vector<16x128xbf16>
    %c0_16 = arith.constant 0 : index
    %c0_17 = arith.constant 0 : index
    %27 = vector.load %arg2[%c0_16, %c0_17] : memref<128x128xbf16, #tpu.memory_space<vmem>>, vector<128x128xbf16>
    %c0_18 = arith.constant 0 : index
    %c0_19 = arith.constant 0 : index
    %28 = vector.load %arg6[%c0_18, %c0_19] : memref<4x256xf32, #tpu.memory_space<vmem>>, vector<1x128xf32>
    %cst_20 = arith.constant dense<0.000000e+00> : vector<16x128xf32>
    %29 = tpu.matmul %26, %27, %cst_20 {dimension_numbers = #tpu.dot_dimension_numbers<[1], [0], [0], [1], [0, 0, 1, 1], [], []>} : vector<16x128xbf16>, vector<128x128xbf16>, vector<16x128xf32> -> vector<16x128xf32>
    %30 = vector.broadcast %28 : vector<1x128xf32> to vector<16x128xf32>
    %31 = arith.addf %29, %30 : vector<16x128xf32>
    %cst_21 = arith.constant 0.000000e+00 : f32
    %32 = vector.broadcast %cst_21 : f32 to vector<16x128xf32>
    %33 = arith.maximumf %31, %32 : vector<16x128xf32>
    %34 = arith.truncf %33 : vector<16x128xf32> to vector<16x128xbf16>
    %c0_22 = arith.constant 0 : index
    %c0_23 = arith.constant 0 : index
    %35 = vector.load %arg5[%c0_22, %c0_23] : memref<128x8xbf16, #tpu.memory_space<vmem>>, vector<128x8xbf16>
    %c3 = arith.constant 3 : index
    %c0_24 = arith.constant 0 : index
    %36 = vector.load %arg6[%c3, %c0_24] : memref<4x256xf32, #tpu.memory_space<vmem>>, vector<1x8xf32>
    %cst_25 = arith.constant dense<0.000000e+00> : vector<16x8xf32>
    %37 = tpu.matmul %34, %35, %cst_25 {dimension_numbers = #tpu.dot_dimension_numbers<[1], [0], [0], [1], [0, 0, 1, 1], [], []>} : vector<16x128xbf16>, vector<128x8xbf16>, vector<16x8xf32> -> vector<16x8xf32>
    %38 = vector.broadcast %36 : vector<1x8xf32> to vector<16x8xf32>
    %39 = arith.addf %37, %38 : vector<16x8xf32>
    %cst_26 = arith.constant 0.000000e+00 : f32
    %40 = vector.broadcast %cst_26 : f32 to vector<16x112xf32>
    %41 = tpu.concatenate %24, %39, %40 in 1 : vector<16x8xf32>, vector<16x8xf32>, vector<16x112xf32> -> vector<16x128xf32>
    %c0_27 = arith.constant 0 : index
    %c0_28 = arith.constant 0 : index
    %42 = vector.load %arg7[%c0_27, %c0_28] : memref<16x128xf32, #tpu.memory_space<vmem>>, vector<16x128xf32>
    tpu.vector_store %arg7[%c0_27, %c0_28], %41 {strides = array<i32>} : memref<16x128xf32, #tpu.memory_space<vmem>>, vector<16x128xf32>,
    return
  }
  func.func @transform_0(%arg0: i32) -> (i32, i32) {
    %c0_i32 = arith.constant 0 : i32
    %c0_i32_0 = arith.constant 0 : i32
    return %arg0, %c0_i32 : i32, i32
  }
  func.func @transform_1(%arg0: i32) -> (i32, i32) {
    %c0_i32 = arith.constant 0 : i32
    %c0_i32_0 = arith.constant 0 : i32
    %c0_i32_1 = arith.constant 0 : i32
    return %c0_i32, %c0_i32_0 : i32, i32
  }
  func.func @transform_2(%arg0: i32) -> (i32, i32) {
    %c0_i32 = arith.constant 0 : i32
    %c0_i32_0 = arith.constant 0 : i32
    %c0_i32_1 = arith.constant 0 : i32
    return %c0_i32, %c0_i32_0 : i32, i32
  }
  func.func @transform_3(%arg0: i32) -> (i32, i32) {
    %c0_i32 = arith.constant 0 : i32
    %c0_i32_0 = arith.constant 0 : i32
    %c0_i32_1 = arith.constant 0 : i32
    return %c0_i32, %c0_i32_0 : i32, i32
  }
  func.func @transform_4(%arg0: i32) -> (i32, i32) {
    %c0_i32 = arith.constant 0 : i32
    %c0_i32_0 = arith.constant 0 : i32
    %c0_i32_1 = arith.constant 0 : i32
    return %c0_i32, %c0_i32_0 : i32, i32
  }
  func.func @transform_5(%arg0: i32) -> (i32, i32) {
    %c0_i32 = arith.constant 0 : i32
    %c0_i32_0 = arith.constant 0 : i32
    %c0_i32_1 = arith.constant 0 : i32
    return %c0_i32, %c0_i32_0 : i32, i32
  }
  func.func @transform_6(%arg0: i32) -> (i32, i32) {
    %c0_i32 = arith.constant 0 : i32
    %c0_i32_0 = arith.constant 0 : i32
    return %arg0, %c0_i32 : i32, i32
  }
}

</mosaic_0001>

<llo_original>
// kernel: tpu_custom_call.1
$region0: #{tpu_custom_call.1}
  #allocation0 [shape = 'u32[]', space=smem, size = 0x4, offset = 0x4, fixed_abs, tag = 'smem constant byte address 0x4 - core index']
  #allocation1 [shape = 'u32[72,128]{1,0:T(1,128)}', space=vmem, size = 0x9000, scoped, tag = 'internal scratch']
  %s0 = inlined_call_operand.vmem [shape: bf16[16,128], index: 0, kind: input, shape index: {}]
  %s1 = inlined_call_operand.vmem [shape: bf16[128,128], index: 1, kind: input, shape index: {}]
  %s2 = inlined_call_operand.vmem [shape: bf16[128,128], index: 2, kind: input, shape index: {}]
  %s3 = inlined_call_operand.vmem [shape: bf16[128,136], index: 3, kind: input, shape index: {}]
  %s4 = inlined_call_operand.vmem [shape: bf16[128,8], index: 4, kind: input, shape index: {}]
  %s5 = inlined_call_operand.vmem [shape: f32[4,256], index: 5, kind: input, shape index: {}]
  %s6 = inlined_call_operand.hbm [shape: f32[16,128], index: 6, kind: output, shape index: {}]
  %s7 = sld [smem:[#allocation0]]
  $region34: #{tpu_custom_call.1} parent=0
    _
  %s9 = ssub.s32 1, %s7
  %s10 = scalar_select 0, %s9, %s7
  $region1: #{tpu_custom_call.1} parent=0
    #allocation2 [shape = 'u8[8192]{0}', space=vmem, size = 0x2000, scoped, tag = 'output window, operand 0, single buffered']
    #allocation3 [shape = 's32[1]{0}', space=sflag, size = 0x4, scoped, tag = 'scoped memory for tpu_custom_call.1']
    %11 = vsyncpa [#allocation3], 0
    // Predicated region
    $region2: #{tpu_custom_call.1} parent=1 // pred_check
      _
    $region3: #{tpu_custom_call.1} parent=1 // pred_check_branch
      %13 = sbr.rel (0) target = $region5
    $region4: #{tpu_custom_call.1} parent=1 // pred_region
      _
    $region5: #{tpu_custom_call.1} parent=1 // pred_fallthru
      _
    // Predicated region
    $region6: #{tpu_custom_call.1} parent=1 // pred_check
      _
    $region7: #{tpu_custom_call.1} parent=1 // pred_check_branch
      %15 = sbr.rel (0) target = $region9
    $region8: #{tpu_custom_call.1} parent=1 // pred_region
      _
    $region9: #{tpu_custom_call.1} parent=1 // pred_fallthru
      _
    // Predicated region
    $region10: #{tpu_custom_call.1} parent=1 // pred_check
      _
    $region11: #{tpu_custom_call.1} parent=1 // pred_check_branch
      %17 = sbr.rel (0) target = $region13
    $region12: #{tpu_custom_call.1} parent=1 // pred_region
      _
    $region13: #{tpu_custom_call.1} parent=1 // pred_fallthru
      _
    // Predicated region
    $region14: #{tpu_custom_call.1} parent=1 // pred_check
      _
    $region15: #{tpu_custom_call.1} parent=1 // pred_check_branch
      %19 = sbr.rel (0) target = $region17
    $region16: #{tpu_custom_call.1} parent=1 // pred_region
      _
    $region17: #{tpu_custom_call.1} parent=1 // pred_fallthru
      _
    // Predicated region
    $region18: #{tpu_custom_call.1} parent=1 // pred_check
      _
    $region19: #{tpu_custom_call.1} parent=1 // pred_check_branch
      %21 = sbr.rel (0) target = $region21
    $region20: #{tpu_custom_call.1} parent=1 // pred_region
      _
    $region21: #{tpu_custom_call.1} parent=1 // pred_fallthru
      _
    // Predicated region
    $region22: #{tpu_custom_call.1} parent=1 // pred_check
      _
    $region23: #{tpu_custom_call.1} parent=1 // pred_check_branch
      %23 = sbr.rel (0) target = $region25
    $region24: #{tpu_custom_call.1} parent=1 // pred_region
      _
    $region25: #{tpu_custom_call.1} parent=1 // pred_fallthru
      _
    %v24 = vld [vmem:[%s0] sm:$0xf]
    %v25 = vld [vmem:[%s0 + $0x4] sm:$0xf]
    %v26 = vld [vmem:[%s1] sm:$0xf]
    %v27 = vld [vmem:[%s1 + $0x4] sm:$0xf]
    %v28 = vld [vmem:[%s1 + $0x8] sm:$0xf]
    %v29 = vld [vmem:[%s1 + $0xc] sm:$0xf]
    %v30 = vld [vmem:[%s1 + $0x10] sm:$0xf]
    %v31 = vld [vmem:[%s1 + $0x14] sm:$0xf]
    %v32 = vld [vmem:[%s1 + $0x18] sm:$0xf]
    %v33 = vld [vmem:[%s1 + $0x1c] sm:$0xf]
    %v34 = vld [vmem:[%s1 + $0x20] sm:$0xf]
    %v35 = vld [vmem:[%s1 + $0x24] sm:$0xf]
    %v36 = vld [vmem:[%s1 + $0x28] sm:$0xf]
    %v37 = vld [vmem:[%s1 + $0x2c] sm:$0xf]
    %v38 = vld [vmem:[%s1 + $0x30] sm:$0xf]
    %v39 = vld [vmem:[%s1 + $0x34] sm:$0xf]
    %v40 = vld [vmem:[%s1 + $0x38] sm:$0xf]
    %v41 = vld [vmem:[%s1 + $0x3c] sm:$0xf]
    %v42 = vld [vmem:[%s5] sm:$0x1]
    %v43 = vperm.slane %v42, 0
    %v46 = vunpack.c.l.b16 %v24
    %v47 = vunpack.c.l.b16 %v25
    %v48 = vpack.c.b16 %v47, %v46
    %v66 = vunpack.c.l.b16 %v26
    %v67 = vunpack.c.l.b16 %v27
    %v68 = vunpack.c.l.b16 %v28
    %v69 = vunpack.c.l.b16 %v29
    %v70 = vunpack.c.l.b16 %v30
    %v71 = vunpack.c.l.b16 %v31
    %v72 = vunpack.c.l.b16 %v32
    %v73 = vunpack.c.l.b16 %v33
    %v74 = vunpack.c.l.b16 %v34
    %v75 = vunpack.c.l.b16 %v35
    %v76 = vunpack.c.l.b16 %v36
    %v77 = vunpack.c.l.b16 %v37
    %v78 = vunpack.c.l.b16 %v38
    %v79 = vunpack.c.l.b16 %v39
    %v80 = vunpack.c.l.b16 %v40
    %v81 = vunpack.c.l.b16 %v41
    %v82 = vpack.c.b16 %v67, %v66
    %v83 = vpack.c.b16 %v69, %v68
    %v84 = vpack.c.b16 %v71, %v70
    %v85 = vpack.c.b16 %v73, %v72
    %v86 = vpack.c.b16 %v75, %v74
    %v87 = vpack.c.b16 %v77, %v76
    %v88 = vpack.c.b16 %v79, %v78
    %v89 = vpack.c.b16 %v81, %v80
    %98 = vmatpush.bf16.msra.mxu0 %v89
    %99 = vmatpush.bf16.msra.mxu0 %v88
    %100 = vmatpush.bf16.msra.mxu0 %v87
    %101 = vmatpush.bf16.msra.mxu0 %v86
    %102 = vmatpush.bf16.msra.mxu0 %v85
    %103 = vmatpush.bf16.msra.mxu0 %v84
    %104 = vmatpush.bf16.msra.mxu0 %v83
    %105 = vmatpush.bf16.msra.mxu0 %v82
    %106 = vmatmul.bf16.gmra.mxu0 %v48
    %v107 = vpop.f32.mrf.mxu0
    %v108 = vadd.f32 %v43, %v107
    %v109 = vpop.f32.mrf.mxu0
    %v110 = vadd.f32 %v43, %v109
    %111 = vdwg.mxu0
    %v112 = vmax.f32 %v108, 0.0
    %v113 = vmax.f32 %v110, 0.0
    %v114 = vpack.c.bf16 %v113, %v112
    %v115 = vld [vmem:[%s2] sm:$0xf]
    %v116 = vld [vmem:[%s2 + $0x4] sm:$0xf]
    %v117 = vld [vmem:[%s2 + $0x8] sm:$0xf]
    %v118 = vld [vmem:[%s2 + $0xc] sm:$0xf]
    %v119 = vld [vmem:[%s2 + $0x10] sm:$0xf]
    %v120 = vld [vmem:[%s2 + $0x14] sm:$0xf]
    %v121 = vld [vmem:[%s2 + $0x18] sm:$0xf]
    %v122 = vld [vmem:[%s2 + $0x1c] sm:$0xf]
    %v123 = vld [vmem:[%s2 + $0x20] sm:$0xf]
    %v124 = vld [vmem:[%s2 + $0x24] sm:$0xf]
    %v125 = vld [vmem:[%s2 + $0x28] sm:$0xf]
    %v126 = vld [vmem:[%s2 + $0x2c] sm:$0xf]
    %v127 = vld [vmem:[%s2 + $0x30] sm:$0xf]
    %v128 = vld [vmem:[%s2 + $0x34] sm:$0xf]
    %v129 = vld [vmem:[%s2 + $0x38] sm:$0xf]
    %v130 = vld [vmem:[%s2 + $0x3c] sm:$0xf]
    %v131 = vld [vmem:[%s5 + $0x1] sm:$0x1]
    %v132 = vperm.slane %v131, 0
    %v149 = vunpack.c.l.b16 %v115
    %v150 = vunpack.c.l.b16 %v116
    %v151 = vunpack.c.l.b16 %v117
    %v152 = vunpack.c.l.b16 %v118
    %v153 = vunpack.c.l.b16 %v119
    %v154 = vunpack.c.l.b16 %v120
    %v155 = vunpack.c.l.b16 %v121
    %v156 = vunpack.c.l.b16 %v122
    %v157 = vunpack.c.l.b16 %v123
    %v158 = vunpack.c.l.b16 %v124
    %v159 = vunpack.c.l.b16 %v125
    %v160 = vunpack.c.l.b16 %v126
    %v161 = vunpack.c.l.b16 %v127
    %v162 = vunpack.c.l.b16 %v128
    %v163 = vunpack.c.l.b16 %v129
    %v164 = vunpack.c.l.b16 %v130
    %v165 = vpack.c.b16 %v150, %v149
    %v166 = vpack.c.b16 %v152, %v151
    %v167 = vpack.c.b16 %v154, %v153
    %v168 = vpack.c.b16 %v156, %v155
    %v169 = vpack.c.b16 %v158, %v157
    %v170 = vpack.c.b16 %v160, %v159
    %v171 = vpack.c.b16 %v162, %v161
    %v172 = vpack.c.b16 %v164, %v163
    %181 = vmatpush.bf16.msra.mxu0 %v172
    %182 = vmatpush.bf16.msra.mxu0 %v171
    %183 = vmatpush.bf16.msra.mxu0 %v170
    %184 = vmatpush.bf16.msra.mxu0 %v169
    %185 = vmatpush.bf16.msra.mxu0 %v168
    %186 = vmatpush.bf16.msra.mxu0 %v167
    %187 = vmatpush.bf16.msra.mxu0 %v166
    %188 = vmatpush.bf16.msra.mxu0 %v165
    %189 = vmatmul.bf16.gmra.mxu0 %v114
    %v190 = vpop.f32.mrf.mxu0
    %v191 = vadd.f32 %v132, %v190
    %v192 = vpop.f32.mrf.mxu0
    %v193 = vadd.f32 %v132, %v192
    %194 = vdwg.mxu0
    %v195 = vmax.f32 %v191, 0.0
    %v196 = vmax.f32 %v193, 0.0
    %v197 = vpack.c.bf16 %v196, %v195
    %v198 = vld [vmem:[%s3] sm:$0xff]
    %v199 = vld [vmem:[%s3 + $0x8] sm:$0xff]
    %v200 = vld [vmem:[%s3 + $0x10] sm:$0xff]
    %v201 = vld [vmem:[%s3 + $0x18] sm:$0xff]
    %v202 = vld [vmem:[%s3 + $0x20] sm:$0xff]
    %v203 = vld [vmem:[%s3 + $0x28] sm:$0xff]
    %v204 = vld [vmem:[%s3 + $0x30] sm:$0xff]
    %v205 = vld [vmem:[%s3 + $0x38] sm:$0xff]
    %v206 = vld [vmem:[%s3 + $0x40] sm:$0xff]
    %v207 = vld [vmem:[%s3 + $0x48] sm:$0xff]
    %v208 = vld [vmem:[%s3 + $0x50] sm:$0xff]
    %v209 = vld [vmem:[%s3 + $0x58] sm:$0xff]
    %v210 = vld [vmem:[%s3 + $0x60] sm:$0xff]
    %v211 = vld [vmem:[%s3 + $0x68] sm:$0xff]
    %v212 = vld [vmem:[%s3 + $0x70] sm:$0xff]
    %v213 = vld [vmem:[%s3 + $0x78] sm:$0xff]
    %s214 = scalar_lea.vmem %s5, 2
    %v215 = vld [vmem:[%s214] ss:$4 sm:$0x3]
    %v217 = vperm.slane %v215, 0
    %v218 = vperm.slane %v215, 1
    %v237 = vunpack.c.l.b16 %v198
    %v238 = vunpack.c.h.b16 %v198
    %v239 = vunpack.c.l.b16 %v199
    %v240 = vunpack.c.h.b16 %v199
    %v241 = vunpack.c.l.b16 %v200
    %v242 = vunpack.c.h.b16 %v200
    %v243 = vunpack.c.l.b16 %v201
    %v244 = vunpack.c.h.b16 %v201
    %v245 = vunpack.c.l.b16 %v202
    %v246 = vunpack.c.h.b16 %v202
    %v247 = vunpack.c.l.b16 %v203
    %v248 = vunpack.c.h.b16 %v203
    %v249 = vunpack.c.l.b16 %v204
    %v250 = vunpack.c.h.b16 %v204
    %v251 = vunpack.c.l.b16 %v205
    %v252 = vunpack.c.h.b16 %v205
    %v253 = vunpack.c.l.b16 %v206
    %v254 = vunpack.c.h.b16 %v206
    %v255 = vunpack.c.l.b16 %v207
    %v256 = vunpack.c.h.b16 %v207
    %v257 = vunpack.c.l.b16 %v208
    %v258 = vunpack.c.h.b16 %v208
    %v259 = vunpack.c.l.b16 %v209
    %v260 = vunpack.c.h.b16 %v209
    %v261 = vunpack.c.l.b16 %v210
    %v262 = vunpack.c.h.b16 %v210
    %v263 = vunpack.c.l.b16 %v211
    %v264 = vunpack.c.h.b16 %v211
    %v265 = vunpack.c.l.b16 %v212
    %v266 = vunpack.c.h.b16 %v212
    %v267 = vunpack.c.l.b16 %v213
    %v268 = vunpack.c.h.b16 %v213
    %v269 = vpack.c.b16 %v239, %v237
    %v270 = vpack.c.b16 %v240, %v238
    %v271 = vpack.c.b16 %v243, %v241
    %v272 = vpack.c.b16 %v244, %v242
    %v273 = vpack.c.b16 %v247, %v245
    %v274 = vpack.c.b16 %v248, %v246
    %v275 = vpack.c.b16 %v251, %v249
    %v276 = vpack.c.b16 %v252, %v250
    %v277 = vpack.c.b16 %v255, %v253
    %v278 = vpack.c.b16 %v256, %v254
    %v279 = vpack.c.b16 %v259, %v257
    %v280 = vpack.c.b16 %v260, %v258
    %v281 = vpack.c.b16 %v263, %v261
    %v282 = vpack.c.b16 %v264, %v262
    %v283 = vpack.c.b16 %v267, %v265
    %v284 = vpack.c.b16 %v268, %v266
    %301 = vmatpush.bf16.msra.mxu0 %v283
    %302 = vmatpush.bf16.msra.mxu0 %v281
    %303 = vmatpush.bf16.msra.mxu0 %v279
    %304 = vmatpush.bf16.msra.mxu0 %v277
    %305 = vmatpush.bf16.msra.mxu0 %v275
    %306 = vmatpush.bf16.msra.mxu0 %v273
    %307 = vmatpush.bf16.msra.mxu0 %v271
    %308 = vmatpush.bf16.msra.mxu0 %v269
    %309 = vmatmul.bf16.gmra.mxu0 %v197
    %v310 = vpop.f32.mrf.mxu0
    %v311 = vadd.f32 %v217, %v310
    %v312 = vpop.f32.mrf.mxu0
    %v313 = vadd.f32 %v217, %v312
    %314 = vdwg.mxu0
    %315 = vmatpush.bf16.msra.mxu0 %v284
    %316 = vmatpush.bf16.msra.mxu0 %v282
    %317 = vmatpush.bf16.msra.mxu0 %v280
    %318 = vmatpush.bf16.msra.mxu0 %v278
    %319 = vmatpush.bf16.msra.mxu0 %v276
    %320 = vmatpush.bf16.msra.mxu0 %v274
    %321 = vmatpush.bf16.msra.mxu0 %v272
    %322 = vmatpush.bf16.msra.mxu0 %v270
    %323 = vmatmul.bf16.gmra.mxu0 %v197
    %v324 = vpop.f32.mrf.mxu0
    %v325 = vadd.f32 %v218, %v324
    %v326 = vpop.f32.mrf.mxu0
    %v327 = vadd.f32 %v218, %v326
    %328 = vdwg.mxu0
    %v329 = vmax.f32 %v311, 0.0
    %v330 = vmax.f32 %v325, 0.0
    %v331 = vmax.f32 %v313, 0.0
    %v332 = vmax.f32 %v327, 0.0
    %v333 = vpack.c.bf16 %v331, %v329
    %334 = vmatpush.bf16.msra.mxu0 %v89
    %335 = vmatpush.bf16.msra.mxu0 %v88
    %336 = vmatpush.bf16.msra.mxu0 %v87
    %337 = vmatpush.bf16.msra.mxu0 %v86
    %338 = vmatpush.bf16.msra.mxu0 %v85
    %339 = vmatpush.bf16.msra.mxu0 %v84
    %340 = vmatpush.bf16.msra.mxu0 %v83
    %341 = vmatpush.bf16.msra.mxu0 %v82
    %342 = vmatmul.bf16.gmra.mxu0 %v333
    %v343 = vpop.f32.mrf.mxu0
    %v344 = vadd.f32 %v43, %v343
    %v345 = vpop.f32.mrf.mxu0
    %v346 = vadd.f32 %v43, %v345
    %347 = vdwg.mxu0
    %v348 = vmax.f32 %v344, 0.0
    %v349 = vmax.f32 %v346, 0.0
    %v350 = vpack.c.bf16 %v349, %v348
    %v351 = vld [vmem:[%s4] sm:$0xf]
    %v352 = vld [vmem:[%s4 + $0x4] sm:$0xf]
    %v353 = vld [vmem:[%s4 + $0x8] sm:$0xf]
    %v354 = vld [vmem:[%s4 + $0xc] sm:$0xf]
    %v355 = vld [vmem:[%s4 + $0x10] sm:$0xf]
    %v356 = vld [vmem:[%s4 + $0x14] sm:$0xf]
    %v357 = vld [vmem:[%s4 + $0x18] sm:$0xf]
    %v358 = vld [vmem:[%s4 + $0x1c] sm:$0xf]
    %v359 = vld [vmem:[%s4 + $0x20] sm:$0xf]
    %v360 = vld [vmem:[%s4 + $0x24] sm:$0xf]
    %v361 = vld [vmem:[%s4 + $0x28] sm:$0xf]
    %v362 = vld [vmem:[%s4 + $0x2c] sm:$0xf]
    %v363 = vld [vmem:[%s4 + $0x30] sm:$0xf]
    %v364 = vld [vmem:[%s4 + $0x34] sm:$0xf]
    %v365 = vld [vmem:[%s4 + $0x38] sm:$0xf]
    %v366 = vld [vmem:[%s4 + $0x3c] sm:$0xf]
    %v367 = vld [vmem:[%s5 + $0x3] sm:$0x1]
    %v368 = vperm.slane %v367, 0
    %v385 = vunpack.c.l.b16 %v351
    %v386 = vunpack.c.l.b16 %v352
    %v387 = vunpack.c.l.b16 %v353
    %v388 = vunpack.c.l.b16 %v354
    %v389 = vunpack.c.l.b16 %v355
    %v390 = vunpack.c.l.b16 %v356
    %v391 = vunpack.c.l.b16 %v357
    %v392 = vunpack.c.l.b16 %v358
    %v393 = vunpack.c.l.b16 %v359
    %v394 = vunpack.c.l.b16 %v360
    %v395 = vunpack.c.l.b16 %v361
    %v396 = vunpack.c.l.b16 %v362
    %v397 = vunpack.c.l.b16 %v363
    %v398 = vunpack.c.l.b16 %v364
    %v399 = vunpack.c.l.b16 %v365
    %v400 = vunpack.c.l.b16 %v366
    %v401 = vpack.c.b16 %v386, %v385
    %v402 = vpack.c.b16 %v388, %v387
    %v403 = vpack.c.b16 %v390, %v389
    %v404 = vpack.c.b16 %v392, %v391
    %v405 = vpack.c.b16 %v394, %v393
    %v406 = vpack.c.b16 %v396, %v395
    %v407 = vpack.c.b16 %v398, %v397
    %v408 = vpack.c.b16 %v400, %v399
    %417 = vmatpush.bf16.msra.mxu0 %v408
    %418 = vmatpush.bf16.msra.mxu0 %v407
    %419 = vmatpush.bf16.msra.mxu0 %v406
    %420 = vmatpush.bf16.msra.mxu0 %v405
    %421 = vmatpush.bf16.msra.mxu0 %v404
    %422 = vmatpush.bf16.msra.mxu0 %v403
    %423 = vmatpush.bf16.msra.mxu0 %v402
    %424 = vmatpush.bf16.msra.mxu0 %v401
    %425 = vmatmul.bf16.gmra.mxu0 %v350
    %v426 = vpop.f32.mrf.mxu0
    %v427 = vadd.f32 %v368, %v426
    %v428 = vpop.f32.mrf.mxu0
    %v429 = vadd.f32 %v368, %v428
    %430 = vdwg.mxu0
    %433 = vrot.lane.b32.xlu0 %v427, 8
    %v434 = vpop.permute.xlu0 %433
    %435 = vrot.lane.b32.xlu0 %v429, 8
    %v436 = vpop.permute.xlu0 %435
    %vm439 = vcmask 64512
    %v440 = vsel %vm439, %v330, %v434
    %v441 = vsel %vm439, %v332, %v436
    %vm442 = vcmask 130048
    %v443 = vsel %vm442, %v440, 0.0
    %v444 = vsel %vm442, %v441, 0.0
    %445 = vst [vmem:[#allocation2] sm:$0xff] %v443
    %446 = vst [vmem:[#allocation2 + $0x8] sm:$0xff] %v444
    // Predicated region
    $region26: #{tpu_custom_call.1} parent=1 // pred_check
      _
    $region27: #{tpu_custom_call.1} parent=1 // pred_check_branch
      %448 = sbr.rel (0) target = $region29
    $region28: #{tpu_custom_call.1} parent=1 // pred_region
      %450 = vsyncadd [#allocation3], 0
      %s451 = sshll.u32 [#allocation2], 4
      %s452 = int_to_ptr.vmem [resolvable:$true] %s451
      %s453 = sshll.u32 %s6, 4
      %s454 = int_to_ptr.hbm [resolvable:$true] %s453
      %459 = dma.vmem_to_hbm [thread:$0]  %s452, 256, %s454, [#allocation3], 128, 128, 8
    $region29: #{tpu_custom_call.1} parent=1 // pred_fallthru
      _
    // Predicated region
    $region30: #{tpu_custom_call.1} parent=1 // pred_check
      _
    $region31: #{tpu_custom_call.1} parent=1 // pred_check_branch
      %461 = sbr.rel (0) target = $region33
    $region32: #{tpu_custom_call.1} parent=1 // pred_region
      %463 = dma.done [#allocation3], 256
    $region33: #{tpu_custom_call.1} parent=1 // pred_fallthru
      _
    %464 = vsyncpa [#allocation3], 1

</llo_original>
